<compile_context>
chip_gen: v7x
topology: tpu7x:2x2x1
jax: 0.10.0
libtpu: 0.0.40
codegen_flags: <defaults>
</compile_context>

<pallas_src>
import functools

import jax
import jax.numpy as jnp
from jax.experimental import pallas as pl
from jax.experimental.pallas import tpu as pltpu


def _round_up(x, m):
    return ((x + m - 1) // m) * m


def _vmem_budget_bytes():
    """Physical VMEM minus headroom for compiler scratch.
    v5e/v6e (128 MiB) -> ~112 MiB budget; v7x (64 MiB) -> ~56 MiB budget."""
    phys = 64 * 1024 * 1024  # conservative default if the query is unavailable
    try:
        info = pltpu.get_tpu_info()
        cap = int(getattr(info, "vmem_capacity_bytes", 0) or 0)
        if cap > 0:
            phys = cap
    except Exception:
        pass
    return min(phys - 8 * 1024 * 1024, (phys * 7) // 8)


def _choose_tm(M, tm_request, align):
    """Token tile: align-multiple <= tm_request minimizing padded rows,
    ties broken toward the largest tile (fewest weight re-streams)."""
    cap = max(align, min(_round_up(tm_request, align), _round_up(M, align)))
    cands = {cap}
    for c in (1024, 768, 512, 384, 256, 192, 128, 96, 64, 48, 32, 16, 8):
        if align <= c <= cap and c % align == 0:
            cands.add(c)
    best_c, best_key = None, None
    for c in cands:
        key = (_round_up(M, c) - M, -c)      # least padding, then biggest tile
        if best_key is None or key < best_key:
            best_key, best_c = key, c
    return best_c


def _choose_ti(I_pad, ti_request):
    """Largest 128-multiple divisor of I_pad that is <= ti_request."""
    if I_pad <= 128 or I_pad % 128 != 0:
        return I_pad                          # full extent (legal) - toy shapes only
    want = max(128, (ti_request // 128) * 128)
    if I_pad <= want:
        return I_pad
    best = 128
    for d in range(128, want + 1, 128):
        if I_pad % d == 0:
            best = d
    return best


def _mlp_kernel_f32out(x_ref, w1_ref, w3_ref, w2_ref, o_ref):
    # f32 output: accumulate directly into the resident output block
    # (saves a tm*H*4-byte scratch -> headroom for a larger token tile).
    j = pl.program_id(1)

    @pl.when(j == 0)
    def _init():
        o_ref[...] = jnp.zeros_like(o_ref)

    x = x_ref[...]
    h1 = jnp.dot(x, w1_ref[...], preferred_element_type=jnp.float32)
    h3 = jnp.dot(x, w3_ref[...], preferred_element_type=jnp.float32)
    gated = (h1 * jax.nn.sigmoid(h1)) * h3
    o_ref[...] += jnp.dot(gated.astype(w2_ref.dtype), w2_ref[...],
                          preferred_element_type=jnp.float32)


def _mlp_kernel_acc(x_ref, w1_ref, w3_ref, w2_ref, o_ref, acc_ref):
    # Non-f32 (e.g. bf16) output: f32 accumulator resident across the I axis,
    # cast + store once on the last reduction step.
    j = pl.program_id(1)

    @pl.when(j == 0)
    def _init():
        acc_ref[...] = jnp.zeros_like(acc_ref)

    x = x_ref[...]
    h1 = jnp.dot(x, w1_ref[...], preferred_element_type=jnp.float32)
    h3 = jnp.dot(x, w3_ref[...], preferred_element_type=jnp.float32)
    gated = (h1 * jax.nn.sigmoid(h1)) * h3
    acc_ref[...] += jnp.dot(gated.astype(w2_ref.dtype), w2_ref[...],
                            preferred_element_type=jnp.float32)

    @pl.when(j == pl.num_programs(1) - 1)
    def _store():
        o_ref[...] = acc_ref[...].astype(o_ref.dtype)


@functools.partial(jax.jit, static_argnames=("tm", "ti"))
def llama_mlp_tp(x, w1_t, w3_t, w2_t, *, tm=512, ti=256):
    """x: (B, S, H); w1_t/w3_t: (H, I) (= W1^T / W3^T); w2_t: (I, H) (= W2^T).

    Returns (B, S, H) = (silu(x @ w1_t) * (x @ w3_t)) @ w2_t.
    """
    B, S, H = x.shape
    I = w1_t.shape[1]
    assert w1_t.shape == (H, I) and w3_t.shape == (H, I) and w2_t.shape == (I, H)
    M = B * S
    x2d = x.reshape(M, H)

    x_bytes = jnp.dtype(x.dtype).itemsize
    w_bytes = jnp.dtype(w1_t.dtype).itemsize
    out_dtype = x.dtype
    out_bytes = jnp.dtype(out_dtype).itemsize
    need_acc = out_dtype != jnp.float32

    # Sublane alignment for the token tile: 8 rows for 32-bit, 16 for 16-bit.
    align = max(8, 32 // x_bytes)

    # --- intermediate dim: pad to a 128-lane multiple only if the shape is odd.
    if I > 128 and I % 128 != 0:
        # TODO(synk): in a real model, pad W1/W3/W2 once at weight-load time.
        I_pad = _round_up(I, 128)
        w1_t = jnp.pad(w1_t, ((0, 0), (0, I_pad - I)))
        w3_t = jnp.pad(w3_t, ((0, 0), (0, I_pad - I)))
        w2_t = jnp.pad(w2_t, ((0, I_pad - I), (0, 0)))
    else:
        I_pad = I

    # --- pick tiles, then shrink (ti first, then tm) until the double-buffered
    #     working set fits the per-chip VMEM budget.
    budget = _vmem_budget_bytes()
    tm_eff = _choose_tm(M, tm, align)
    ti_eff = _choose_ti(I_pad, ti)

    def vmem_bytes(tm_, ti_):
        b = 2 * tm_ * H * x_bytes            # x tile (double buffered)
        b += 2 * 2 * H * ti_ * w_bytes       # W1 + W3 slabs
        b += 2 * ti_ * H * w_bytes           # W2 slab
        b += 2 * tm_ * H * out_bytes         # out tile
        if need_acc:
            b += tm_ * H * 4                 # f32 accumulator scratch
        return b

    while (vmem_bytes(tm_eff, ti_eff) > budget and ti_eff > 128
           and I_pad % 128 == 0):
        new_ti = _choose_ti(I_pad, ti_eff // 2)
        if new_ti >= ti_eff:
            break
        ti_eff = new_ti
    while vmem_bytes(tm_eff, ti_eff) > budget and tm_eff > align:
        tm_eff = max(align, _round_up(tm_eff // 2, align))

    n_i = I_pad // ti_eff

    # --- pad ragged token count to the token tile.
    m_pad = _round_up(M, tm_eff)
    if m_pad != M:
        x2d = jnp.pad(x2d, ((0, m_pad - M), (0, 0)))
    n_m = m_pad // tm_eff

    cost = pl.CostEstimate(
        flops=6 * m_pad * H * I_pad,                      # two up-proj dots + down proj
        transcendentals=m_pad * I_pad,                    # sigmoid
        bytes_accessed=(m_pad * H * x_bytes               # x read once per token tile
                        + n_m * 3 * H * I_pad * w_bytes   # weights re-streamed per tile
                        + m_pad * H * out_bytes),         # out written once
    )

    kernel = _mlp_kernel_acc if need_acc else _mlp_kernel_f32out
    scratch = [pltpu.VMEM((tm_eff, H), jnp.float32)] if need_acc else []

    out2d = pl.pallas_call(
        kernel,
        out_shape=jax.ShapeDtypeStruct((m_pad, H), out_dtype),
        grid_spec=pltpu.PrefetchScalarGridSpec(
            num_scalar_prefetch=0,
            grid=(n_m, n_i),                                      # reduction axis last
            in_specs=[
                pl.BlockSpec((tm_eff, H), lambda i, j: (i, 0)),   # x: resident over j
                pl.BlockSpec((H, ti_eff), lambda i, j: (0, j)),   # W1 slab
                pl.BlockSpec((H, ti_eff), lambda i, j: (0, j)),   # W3 slab
                pl.BlockSpec((ti_eff, H), lambda i, j: (j, 0)),   # W2 slab
            ],
            out_specs=pl.BlockSpec((tm_eff, H), lambda i, j: (i, 0)),  # resident over j
            scratch_shapes=scratch,
        ),
        compiler_params=pltpu.CompilerParams(
            dimension_semantics=("parallel", "arbitrary"),
            vmem_limit_bytes=int(budget),
        ),
        cost_estimate=cost,
    )(x2d, w1_t, w3_t, w2_t)

    if m_pad != M:
        out2d = out2d[:M]
    return out2d.reshape(B, S, H)


def _reference_mlp(x, w1_t, w3_t, w2_t):
    h1 = x @ w1_t
    h3 = x @ w3_t
    return (jax.nn.silu(h1) * h3) @ w2_t


if __name__ == "__main__":
    # Module hyper-parameters (as get_args() would supply them), kept small.
    hidden_size = 128
    multiple_of = 128
    num_layers = 2
    init_method_std = 0.02

    intermediate_size = int(8 * hidden_size / 3)
    intermediate_size = multiple_of * (
        (intermediate_size + multiple_of - 1) // multiple_of
    )  # -> 384

    key = jax.random.PRNGKey(0)
    kx, k1, k2, k3, kx2 = jax.random.split(key, 5)

    # ColumnParallelLinear w1/w3: init_method_normal(std); stored transposed (H, I).
    w1_t = init_method_std * jax.random.normal(
        k1, (hidden_size, intermediate_size), dtype=jnp.float32)
    w3_t = init_method_std * jax.random.normal(
        k3, (hidden_size, intermediate_size), dtype=jnp.float32)
    # RowParallelLinear w2: scaled_init_method_normal(std, num_layers); stored (I, H).
    scaled_std = init_method_std / (2.0 * num_layers) ** 0.5
    w2_t = scaled_std * jax.random.normal(
        k2, (intermediate_size, hidden_size), dtype=jnp.float32)

    # Test 1: f32, multi-step I reduction (ti=128 -> 3 steps), accumulate-in-output path.
    batch, seq = 2, 8
    x = jax.random.normal(kx, (batch, seq, hidden_size), dtype=jnp.float32)
    out = jax.block_until_ready(llama_mlp_tp(x, w1_t, w3_t, w2_t, ti=128))
    ref = _reference_mlp(x, w1_t, w3_t, w2_t)
    assert out.shape == (batch, seq, hidden_size)
    assert jnp.allclose(out, ref, atol=2e-4, rtol=2e-4)

    # Test 2: ragged token count (exercises the M-padding path).
    batch2, seq2 = 3, 5
    x2 = jax.random.normal(kx2, (batch2, seq2, hidden_size), dtype=jnp.float32)
    out2 = jax.block_until_ready(llama_mlp_tp(x2, w1_t, w3_t, w2_t))
    ref2 = _reference_mlp(x2, w1_t, w3_t, w2_t)
    assert out2.shape == (batch2, seq2, hidden_size)
    assert jnp.allclose(out2, ref2, atol=2e-4, rtol=2e-4)

    # Test 3: bf16 activations + weights (exercises the f32-scratch accumulator path).
    xb = x.astype(jnp.bfloat16)
    w1b, w3b, w2b = (w.astype(jnp.bfloat16) for w in (w1_t, w3_t, w2_t))
    out3 = jax.block_until_ready(llama_mlp_tp(xb, w1b, w3b, w2b))
    ref3 = _reference_mlp(xb.astype(jnp.float32), w1b.astype(jnp.float32),
                          w3b.astype(jnp.float32), w2b.astype(jnp.float32))
    assert out3.dtype == jnp.bfloat16
    assert jnp.allclose(out3.astype(jnp.float32), ref3, atol=1e-3, rtol=5e-2)

    # Test 4: intermediate dim not 128-aligned (exercises the I-padding path).
    I_odd = 320
    out4 = jax.block_until_ready(
        llama_mlp_tp(x, w1_t[:, :I_odd], w3_t[:, :I_odd], w2_t[:I_odd, :]))
    ref4 = _reference_mlp(x, w1_t[:, :I_odd], w3_t[:, :I_odd], w2_t[:I_odd, :])
    assert jnp.allclose(out4, ref4, atol=2e-4, rtol=2e-4)

    print("KERNEL_OK")
</pallas_src>

<mosaic_0001>
module attributes {stable_mosaic.version = 11 : i64} {
  func.func @_mlp_kernel_f32out(%arg0: i32, %arg1: i32, %arg2: memref<16x128xf32, #tpu.memory_space<vmem>>, %arg3: memref<128x128xf32, #tpu.memory_space<vmem>>, %arg4: memref<128x128xf32, #tpu.memory_space<vmem>>, %arg5: memref<128x128xf32, #tpu.memory_space<vmem>>, %arg6: memref<16x128xf32, #tpu.memory_space<vmem>>) attributes {dimension_semantics = [#tpu.dimension_semantics<parallel>, #tpu.dimension_semantics<arbitrary>], iteration_bounds = array<i64: 1, 3>, scalar_prefetch = 0 : i64, scratch_operands = 0 : i64, tpu.core_type = #tpu.core_type<tc>, window_params = [{transform_indices = @transform_0, window_bounds = array<i64: 16, 128>}, {transform_indices = @transform_1, window_bounds = array<i64: 128, 128>}, {transform_indices = @transform_2, window_bounds = array<i64: 128, 128>}, {transform_indices = @transform_3, window_bounds = array<i64: 128, 128>}, {transform_indices = @transform_4, window_bounds = array<i64: 16, 128>}]} {
    %c0_i32 = arith.constant 0 : i32
    %0 = arith.cmpi eq, %arg1, %c0_i32 : i32
    %1 = arith.extui %0 : i1 to i32
    %c0_i32_0 = arith.constant 0 : i32
    %2 = arith.cmpi ne, %1, %c0_i32_0 : i32
    scf.if %2 {
      %cst_15 = arith.constant 0.000000e+00 : f32
      %20 = vector.broadcast %cst_15 : f32 to vector<16x128xf32>
      %c0_16 = arith.constant 0 : index
      %c0_17 = arith.constant 0 : index
      %21 = vector.load %arg6[%c0_16, %c0_17] : memref<16x128xf32, #tpu.memory_space<vmem>>, vector<16x128xf32>
      tpu.vector_store %arg6[%c0_16, %c0_17], %20 {strides = array<i32>} : memref<16x128xf32, #tpu.memory_space<vmem>>, vector<16x128xf32>,
    } else {
    }
    %c0 = arith.constant 0 : index
    %c0_1 = arith.constant 0 : index
    %3 = vector.load %arg2[%c0, %c0_1] : memref<16x128xf32, #tpu.memory_space<vmem>>, vector<16x128xf32>
    %c0_2 = arith.constant 0 : index
    %c0_3 = arith.constant 0 : index
    %4 = vector.load %arg3[%c0_2, %c0_3] : memref<128x128xf32, #tpu.memory_space<vmem>>, vector<128x128xf32>
    %cst = arith.constant dense<0.000000e+00> : vector<16x128xf32>
    %5 = tpu.matmul %3, %4, %cst {dimension_numbers = #tpu.dot_dimension_numbers<[1], [0], [0], [1], [0, 0, 1, 1], [], []>} : vector<16x128xf32>, vector<128x128xf32>, vector<16x128xf32> -> vector<16x128xf32>
    %c0_4 = arith.constant 0 : index
    %c0_5 = arith.constant 0 : index
    %6 = vector.load %arg4[%c0_4, %c0_5] : memref<128x128xf32, #tpu.memory_space<vmem>>, vector<128x128xf32>
    %cst_6 = arith.constant dense<0.000000e+00> : vector<16x128xf32>
    %7 = tpu.matmul %3, %6, %cst_6 {dimension_numbers = #tpu.dot_dimension_numbers<[1], [0], [0], [1], [0, 0, 1, 1], [], []>} : vector<16x128xf32>, vector<128x128xf32>, vector<16x128xf32> -> vector<16x128xf32>
    %8 = arith.negf %5 : vector<16x128xf32>
    %9 = math.exp %8 : vector<16x128xf32>
    %cst_7 = arith.constant 1.000000e+00 : f32
    %10 = vector.broadcast %cst_7 : f32 to vector<16x128xf32>
    %11 = arith.addf %10, %9 : vector<16x128xf32>
    %12 = arith.divf %10, %11 : vector<16x128xf32>
    %13 = arith.mulf %5, %12 : vector<16x128xf32>
    %14 = arith.mulf %13, %7 : vector<16x128xf32>
    %c0_8 = arith.constant 0 : index
    %c0_9 = arith.constant 0 : index
    %15 = vector.load %arg6[%c0_8, %c0_9] : memref<16x128xf32, #tpu.memory_space<vmem>>, vector<16x128xf32>
    %c0_10 = arith.constant 0 : index
    %c0_11 = arith.constant 0 : index
    %16 = vector.load %arg5[%c0_10, %c0_11] : memref<128x128xf32, #tpu.memory_space<vmem>>, vector<128x128xf32>
    %cst_12 = arith.constant dense<0.000000e+00> : vector<16x128xf32>
    %17 = tpu.matmul %14, %16, %cst_12 {dimension_numbers = #tpu.dot_dimension_numbers<[1], [0], [0], [1], [0, 0, 1, 1], [], []>} : vector<16x128xf32>, vector<128x128xf32>, vector<16x128xf32> -> vector<16x128xf32>
    %18 = arith.addf %15, %17 : vector<16x128xf32>
    %c0_13 = arith.constant 0 : index
    %c0_14 = arith.constant 0 : index
    %19 = vector.load %arg6[%c0_13, %c0_14] : memref<16x128xf32, #tpu.memory_space<vmem>>, vector<16x128xf32>
    tpu.vector_store %arg6[%c0_13, %c0_14], %18 {strides = array<i32>} : memref<16x128xf32, #tpu.memory_space<vmem>>, vector<16x128xf32>,
    return
  }
  func.func @transform_0(%arg0: i32, %arg1: i32) -> (i32, i32) {
    %c0_i32 = arith.constant 0 : i32
    %c0_i32_0 = arith.constant 0 : i32
    return %arg0, %c0_i32 : i32, i32
  }
  func.func @transform_1(%arg0: i32, %arg1: i32) -> (i32, i32) {
    %c0_i32 = arith.constant 0 : i32
    %c0_i32_0 = arith.constant 0 : i32
    return %c0_i32, %arg1 : i32, i32
  }
  func.func @transform_2(%arg0: i32, %arg1: i32) -> (i32, i32) {
    %c0_i32 = arith.constant 0 : i32
    %c0_i32_0 = arith.constant 0 : i32
    return %c0_i32, %arg1 : i32, i32
  }
  func.func @transform_3(%arg0: i32, %arg1: i32) -> (i32, i32) {
    %c0_i32 = arith.constant 0 : i32
    %c0_i32_0 = arith.constant 0 : i32
    return %arg1, %c0_i32 : i32, i32
  }
  func.func @transform_4(%arg0: i32, %arg1: i32) -> (i32, i32) {
    %c0_i32 = arith.constant 0 : i32
    %c0_i32_0 = arith.constant 0 : i32
    return %arg0, %c0_i32 : i32, i32
  }
}

</mosaic_0001>

<llo_original>
// kernel: llama_mlp_tp.1
$region0: #{llama_mlp_tp.1}
  #allocation0 [shape = 'u32[]', space=smem, size = 0x4, offset = 0x4, fixed_abs, tag = 'smem constant byte address 0x4 - core index']
  #allocation1 [shape = 'u32[144,128]{1,0:T(1,128)}', space=vmem, size = 0x12000, scoped, tag = 'internal scratch']
  %s0 = inlined_call_operand.hbm [shape: f32[16,128], index: 0, kind: input, shape index: {}]
  %s1 = inlined_call_operand.hbm [shape: f32[128,384], index: 1, kind: input, shape index: {}]
  %s2 = inlined_call_operand.hbm [shape: f32[128,384], index: 2, kind: input, shape index: {}]
  %s3 = inlined_call_operand.hbm [shape: f32[384,128], index: 3, kind: input, shape index: {}]
  %s4 = inlined_call_operand.hbm [shape: f32[16,128], index: 4, kind: output, shape index: {}]
  %s5 = sld [smem:[#allocation0]]
  $region69: #{llama_mlp_tp.1} parent=0
    _
  %s7 = ssub.s32 1, %s5
  %s8 = scalar_select 0, %s7, %s5
  $region1: #{llama_mlp_tp.1} parent=0
    #allocation2 [shape = 'u8[8192]{0}', space=vmem, size = 0x2000, scoped, tag = 'input window, operand 0, single buffered']
    #allocation3 [shape = 's32[2]{0}', space=sflag, size = 0x8, scoped, tag = 'scoped memory for llama_mlp_tp.1']
    #allocation4 [shape = 's32[2]{0}', space=sflag, size = 0x8, scoped, tag = 'scoped memory for llama_mlp_tp.1']
    #allocation5 [shape = 'u8[131072]{0}', space=vmem, size = 0x20000, scoped, tag = 'input window, operand 1']
    #allocation6 [shape = 's32[2]{0}', space=sflag, size = 0x8, scoped, tag = 'scoped memory for llama_mlp_tp.1']
    #allocation7 [shape = 'u8[131072]{0}', space=vmem, size = 0x20000, scoped, tag = 'input window, operand 2']
    #allocation8 [shape = 'u8[131072]{0}', space=vmem, size = 0x20000, scoped, tag = 'input window, operand 3']
    #allocation9 [shape = 's32[2]{0}', space=sflag, size = 0x8, scoped, tag = 'scoped memory for llama_mlp_tp.1']
    #allocation10 [shape = 'u8[8192]{0}', space=vmem, size = 0x2000, scoped, tag = 'output window, operand 0, single buffered']
    %9 = vsyncpa [#allocation3], 0
    %10 = vsyncpa [#allocation6], 0
    %s11 = scalar_lea.sflag [#allocation6], 1
    %12 = vsyncpa %s11, 0
    %13 = vsyncpa [#allocation9], 0
    %s14 = scalar_lea.sflag [#allocation9], 1
    %15 = vsyncpa %s14, 0
    %16 = vsyncpa [#allocation4], 0
    loop: start=0, step=1, limit=5
    $region2: #{llama_mlp_tp.1} parent=1 // loop_pre_header
      _
    $region3: #{llama_mlp_tp.1} parent=1 // loop_header
      %s18 = sphi 0, %s22
      %p19 = scmp.ge.s32.totalorder %s18, 5
      %s25 = sphi 0, %s37
      %s26 = sphi 0, %s33
      %s27 = sphi 0, %s25
      %s28 = sphi 0, %s26
      %s29 = sphi 0, %s27
      %s30 = sphi 0, %s28
      %s40 = sphi 0, %s42
      %s43 = sphi 0, %s40
      %s44 = sphi 0, %s43
      %s60 = sphi 0, %s44
      %s66 = sphi 0, %s68
      %s69 = sphi 0, %s66
      %s70 = sphi 0, %s69
      %s86 = sphi 0, %s70
      %s92 = sphi 0, %s94
      %s95 = sphi 0, %s92
      %s96 = sphi 0, %s95
      %s112 = sphi 0, %s96
      %s118 = sphi 0, %s120
      %s121 = sphi 0, %s118
      %s122 = sphi 0, %s121
      %s138 = sphi 0, %s122
      %s144 = sphi 0, %s146
      %s147 = sphi 0, %s144
      %s148 = sphi 0, %s147
      %s164 = sphi 0, %s148
    $region4: #{llama_mlp_tp.1} parent=1 // loop_header_branch
      %21 = sbr.rel (%p19) target = $region8
    $region5: #{llama_mlp_tp.1} parent=1 // loop_body
      %s23 = ssub.s32 %s18, 1
      %s24 = ssub.s32 %s18, 2
      %s31 = sadd.s32 1, %s26
      %p32 = scmp.ge.s32.totalorder %s31, 3
      %s33 = scalar_select %p32, 0, %s31
      %s34 = sadd.s32 1, %s25
      %s35 = scalar_select %p32, %s34, %s25
      %p36 = scmp.ge.s32.totalorder %s35, 1
      %s37 = scalar_select %p36, 0, %s35
      %s38 = ssub.s32 %s25, %s37
      %p39 = scmp.eq.s32.totalorder %s38, 0
      %s41 = sadd.s32 %s40, 1
      %s42 = scalar_select %p39, %s40, %s41
      %p45 = pneg %p39
      %p46 = scmp.eq.s32.totalorder %s18, 2
      %p47 = por %p45, %p46
      %p48 = scmp.ne.s32.totalorder %s40, %s43
      %p49 = scmp.eq.s32.totalorder %s18, 0
      %p50 = por %p48, %p49
      %p51 = scmp.ne.s32.totalorder %s40, %s43
      %p52 = scmp.eq.s32.totalorder %s23, 2
      %p53 = por %p51, %p52
      %p54 = scmp.ne.s32.totalorder %s43, %s44
      %p55 = scmp.eq.s32.totalorder %s23, 0
      %p56 = por %p54, %p55
      %p57 = scmp.ne.s32.totalorder %s43, %s44
      %p58 = scmp.eq.s32.totalorder %s24, 2
      %p59 = por %p57, %p58
      %p61 = scmp.ne.s32.totalorder %s44, %s60
      %p62 = scmp.eq.s32.totalorder %s24, 0
      %p63 = por %p61, %p62
      %s64 = ssub.s32 %s26, %s33
      %p65 = scmp.eq.s32.totalorder %s64, 0
      %s67 = sadd.s32 %s66, 1
      %s68 = scalar_select %p65, %s66, %s67
      %p71 = pneg %p65
      %p72 = scmp.eq.s32.totalorder %s18, 2
      %p73 = por %p71, %p72
      %p74 = scmp.ne.s32.totalorder %s66, %s69
      %p75 = scmp.eq.s32.totalorder %s18, 0
      %p76 = por %p74, %p75
      %p77 = scmp.ne.s32.totalorder %s66, %s69
      %p78 = scmp.eq.s32.totalorder %s23, 2
      %p79 = por %p77, %p78
      %p80 = scmp.ne.s32.totalorder %s69, %s70
      %p81 = scmp.eq.s32.totalorder %s23, 0
      %p82 = por %p80, %p81
      %p83 = scmp.ne.s32.totalorder %s69, %s70
      %p84 = scmp.eq.s32.totalorder %s24, 2
      %p85 = por %p83, %p84
      %p87 = scmp.ne.s32.totalorder %s70, %s86
      %p88 = scmp.eq.s32.totalorder %s24, 0
      %p89 = por %p87, %p88
      %s90 = ssub.s32 %s26, %s33
      %p91 = scmp.eq.s32.totalorder %s90, 0
      %s93 = sadd.s32 %s92, 1
      %s94 = scalar_select %p91, %s92, %s93
      %p97 = pneg %p91
      %p98 = scmp.eq.s32.totalorder %s18, 2
      %p99 = por %p97, %p98
      %p100 = scmp.ne.s32.totalorder %s92, %s95
      %p101 = scmp.eq.s32.totalorder %s18, 0
      %p102 = por %p100, %p101
      %p103 = scmp.ne.s32.totalorder %s92, %s95
      %p104 = scmp.eq.s32.totalorder %s23, 2
      %p105 = por %p103, %p104
      %p106 = scmp.ne.s32.totalorder %s95, %s96
      %p107 = scmp.eq.s32.totalorder %s23, 0
      %p108 = por %p106, %p107
      %p109 = scmp.ne.s32.totalorder %s95, %s96
      %p110 = scmp.eq.s32.totalorder %s24, 2
      %p111 = por %p109, %p110
      %p113 = scmp.ne.s32.totalorder %s96, %s112
      %p114 = scmp.eq.s32.totalorder %s24, 0
      %p115 = por %p113, %p114
      %s116 = ssub.s32 %s26, %s33
      %p117 = scmp.eq.s32.totalorder %s116, 0
      %s119 = sadd.s32 %s118, 1
      %s120 = scalar_select %p117, %s118, %s119
      %p123 = pneg %p117
      %p124 = scmp.eq.s32.totalorder %s18, 2
      %p125 = por %p123, %p124
      %p126 = scmp.ne.s32.totalorder %s118, %s121
      %p127 = scmp.eq.s32.totalorder %s18, 0
      %p128 = por %p126, %p127
      %p129 = scmp.ne.s32.totalorder %s118, %s121
      %p130 = scmp.eq.s32.totalorder %s23, 2
      %p131 = por %p129, %p130
      %p132 = scmp.ne.s32.totalorder %s121, %s122
      %p133 = scmp.eq.s32.totalorder %s23, 0
      %p134 = por %p132, %p133
      %p135 = scmp.ne.s32.totalorder %s121, %s122
      %p136 = scmp.eq.s32.totalorder %s24, 2
      %p137 = por %p135, %p136
      %p139 = scmp.ne.s32.totalorder %s122, %s138
      %p140 = scmp.eq.s32.totalorder %s24, 0
      %p141 = por %p139, %p140
      %s142 = ssub.s32 %s25, %s37
      %p143 = scmp.eq.s32.totalorder %s142, 0
      %s145 = sadd.s32 %s144, 1
      %s146 = scalar_select %p143, %s144, %s145
      %p149 = pneg %p143
      %p150 = scmp.eq.s32.totalorder %s18, 2
      %p151 = por %p149, %p150
      %p152 = scmp.ne.s32.totalorder %s144, %s147
      %p153 = scmp.eq.s32.totalorder %s18, 0
      %p154 = por %p152, %p153
      %p155 = scmp.ne.s32.totalorder %s144, %s147
      %p156 = scmp.eq.s32.totalorder %s23, 2
      %p157 = por %p155, %p156
      %p158 = scmp.ne.s32.totalorder %s147, %s148
      %p159 = scmp.eq.s32.totalorder %s23, 0
      %p160 = por %p158, %p159
      %p161 = scmp.ne.s32.totalorder %s147, %s148
      %p162 = scmp.eq.s32.totalorder %s24, 2
      %p163 = por %p161, %p162
      %p165 = scmp.ne.s32.totalorder %s148, %s164
      %p166 = scmp.eq.s32.totalorder %s24, 0
      %p167 = por %p165, %p166
      %p168 = scmp.le.s32.totalorder 1, %s18
      %p169 = scmp.lt.s32.totalorder %s18, 4
      %p170 = pnand %p168, %p169
      %p171 = pneg %p170
      // Predicated region
      $region9: #{llama_mlp_tp.1} parent=5 // pred_check
        _
      $region10: #{llama_mlp_tp.1} parent=5 // pred_check_branch
        %173 = sbr.rel (%p170) target = $region12
      $region11: #{llama_mlp_tp.1} parent=5 // pred_region
        %s174 = ssub.s32 %s18, 1
        // Predicated region
        $region13: #{llama_mlp_tp.1} parent=11 // pred_check
          %p175 = pneg %p56
        $region14: #{llama_mlp_tp.1} parent=11 // pred_check_branch
          %177 = sbr.rel (%p175) target = $region16
        $region15: #{llama_mlp_tp.1} parent=11 // pred_region
          %s178 = smul.u32 2, %s27
          %s180 = ssub.s32 256, 256
          %181 = vsyncadd [#allocation3], %s180
          %s182 = smul.addr %s178, 128
          %s183 = scalar_lea.hbm %s0, %s182
          %s184 = sshll.u32 [#allocation2], 4
          %s185 = int_to_ptr.vmem [resolvable:$true] %s184
          %190 = dma.hbm_to_vmem [thread:$0]  %s183, 256, %s185, [#allocation3], 128, 128, 8
        $region16: #{llama_mlp_tp.1} parent=11 // pred_fallthru
          _
      $region12: #{llama_mlp_tp.1} parent=5 // pred_fallthru
        _
      %p191 = scmp.lt.s32.totalorder %s18, 3
      // Predicated region
      $region17: #{llama_mlp_tp.1} parent=5 // pred_check
        %p192 = pneg %p191
      $region18: #{llama_mlp_tp.1} parent=5 // pred_check_branch
        %194 = sbr.rel (%p192) target = $region20
      $region19: #{llama_mlp_tp.1} parent=5 // pred_region
        // Predicated region
        $region21: #{llama_mlp_tp.1} parent=19 // pred_check
          %p195 = pneg %p76
        $region22: #{llama_mlp_tp.1} parent=19 // pred_check_branch
          %197 = sbr.rel (%p195) target = $region24
        $region23: #{llama_mlp_tp.1} parent=19 // pred_region
          %s198 = sand.u32 %s18, 1
          %s199 = scalar_lea.sflag [#allocation6], %s198
          %s200 = sand.u32 %s66, 1
          %s201 = smul.addr %s200, 128
          %s202 = scalar_lea.vmem [#allocation5], %s201
          %s204 = ssub.s32 2048, 2048
          %205 = vsyncadd %s199, %s204
          %s206 = smul.addr %s26, 128
          %s207 = scalar_lea.hbm %s1, %s206
          %s208 = sshll.u32 %s202, 4
          %s209 = int_to_ptr.vmem [resolvable:$true] %s208
          %214 = dma.hbm_to_vmem [thread:$0]  %s207, 2048, %s209, %s199, 384, 128, 8
        $region24: #{llama_mlp_tp.1} parent=19 // pred_fallthru
          _
        // Predicated region
        $region25: #{llama_mlp_tp.1} parent=19 // pred_check
          %p215 = pneg %p102
        $region26: #{llama_mlp_tp.1} parent=19 // pred_check_branch
          %217 = sbr.rel (%p215) target = $region28
        $region27: #{llama_mlp_tp.1} parent=19 // pred_region
          %s218 = sand.u32 %s18, 1
          %s219 = scalar_lea.sflag [#allocation6], %s218
          %s220 = sand.u32 %s92, 1
          %s221 = smul.addr %s220, 128
          %s222 = scalar_lea.vmem [#allocation7], %s221
          %s224 = ssub.s32 2048, 2048
          %225 = vsyncadd %s219, %s224
          %s226 = smul.addr %s26, 128
          %s227 = scalar_lea.hbm %s2, %s226
          %s228 = sshll.u32 %s222, 4
          %s229 = int_to_ptr.vmem [resolvable:$true] %s228
          %234 = dma.hbm_to_vmem [thread:$0]  %s227, 2048, %s229, %s219, 384, 128, 8
        $region28: #{llama_mlp_tp.1} parent=19 // pred_fallthru
          _
        // Predicated region
        $region29: #{llama_mlp_tp.1} parent=19 // pred_check
          %p235 = pneg %p128
        $region30: #{llama_mlp_tp.1} parent=19 // pred_check_branch
          %237 = sbr.rel (%p235) target = $region32
        $region31: #{llama_mlp_tp.1} parent=19 // pred_region
          %s238 = sand.u32 %s118, 1
          %s239 = scalar_lea.sflag [#allocation9], %s238
          %s240 = sand.u32 %s118, 1
          %s241 = smul.addr %s240, 128
          %s242 = scalar_lea.vmem [#allocation8], %s241
          %s243 = smul.u32 16, %s26
          %s245 = ssub.s32 2048, 2048
          %246 = vsyncadd %s239, %s245
          %s247 = smul.addr %s243, 128
          %s248 = scalar_lea.hbm %s3, %s247
          %s249 = sshll.u32 %s242, 4
          %s250 = int_to_ptr.vmem [resolvable:$true] %s249
          %255 = dma.hbm_to_vmem [thread:$0]  %s248, 2048, %s250, %s239, 128, 128, 8
        $region32: #{llama_mlp_tp.1} parent=19 // pred_fallthru
          _
      $region20: #{llama_mlp_tp.1} parent=5 // pred_fallthru
        _
      %p256 = scmp.le.s32.totalorder 1, %s18
      %p257 = scmp.lt.s32.totalorder %s18, 4
      %p258 = pnand %p256, %p257
      %p259 = pneg %p258
      // Predicated region
      $region33: #{llama_mlp_tp.1} parent=5 // pred_check
        _
      $region34: #{llama_mlp_tp.1} parent=5 // pred_check_branch
        %261 = sbr.rel (%p258) target = $region36
      $region35: #{llama_mlp_tp.1} parent=5 // pred_region
        %s262 = ssub.s32 %s18, 1
        // Predicated region
        $region37: #{llama_mlp_tp.1} parent=35 // pred_check
          %p263 = pneg %p56
        $region38: #{llama_mlp_tp.1} parent=35 // pred_check_branch
          %265 = sbr.rel (%p263) target = $region40
        $region39: #{llama_mlp_tp.1} parent=35 // pred_region
          %266 = dma.done [#allocation3], 256
        $region40: #{llama_mlp_tp.1} parent=35 // pred_fallthru
          _
        %s267 = sand.u32 %s23, 1
        %s268 = scalar_lea.sflag [#allocation6], %s267
        %s269 = sand.u32 %s69, 1
        %s270 = smul.addr %s269, 128
        %s271 = scalar_lea.vmem [#allocation5], %s270
        // Predicated region
        $region41: #{llama_mlp_tp.1} parent=35 // pred_check
          %p272 = pneg %p82
        $region42: #{llama_mlp_tp.1} parent=35 // pred_check_branch
          %274 = sbr.rel (%p272) target = $region44
        $region43: #{llama_mlp_tp.1} parent=35 // pred_region
          %275 = dma.done %s268, 2048
        $region44: #{llama_mlp_tp.1} parent=35 // pred_fallthru
          _
        %s276 = sand.u32 %s23, 1
        %s277 = scalar_lea.sflag [#allocation6], %s276
        %s278 = sand.u32 %s95, 1
        %s279 = smul.addr %s278, 128
        %s280 = scalar_lea.vmem [#allocation7], %s279
        // Predicated region
        $region45: #{llama_mlp_tp.1} parent=35 // pred_check
          %p281 = pneg %p108
        $region46: #{llama_mlp_tp.1} parent=35 // pred_check_branch
          %283 = sbr.rel (%p281) target = $region48
        $region47: #{llama_mlp_tp.1} parent=35 // pred_region
          %284 = dma.done %s277, 2048
        $region48: #{llama_mlp_tp.1} parent=35 // pred_fallthru
          _
        %s285 = sand.u32 %s121, 1
        %s286 = scalar_lea.sflag [#allocation9], %s285
        %s287 = sand.u32 %s121, 1
        %s288 = smul.addr %s287, 128
        %s289 = scalar_lea.vmem [#allocation8], %s288
        // Predicated region
        $region49: #{llama_mlp_tp.1} parent=35 // pred_check
          %p290 = pneg %p134
        $region50: #{llama_mlp_tp.1} parent=35 // pred_check_branch
          %292 = sbr.rel (%p290) target = $region52
        $region51: #{llama_mlp_tp.1} parent=35 // pred_region
          %293 = dma.done %s286, 2048
        $region52: #{llama_mlp_tp.1} parent=35 // pred_fallthru
          _
        %p294 = pneg %p56
        %p295 = pneg %p53
        %s296 = sand.u32 %s23, 1
        %s297 = scalar_lea.sflag [#allocation6], %s296
        %s298 = sand.u32 %s69, 1
        %s299 = smul.addr %s298, 128
        %s300 = scalar_lea.vmem [#allocation5], %s299
        %p301 = pneg %p82
        %p302 = pneg %p79
        %s303 = sand.u32 %s23, 1
        %s304 = scalar_lea.sflag [#allocation6], %s303
        %s305 = sand.u32 %s95, 1
        %s306 = smul.addr %s305, 128
        %s307 = scalar_lea.vmem [#allocation7], %s306
        %p308 = pneg %p108
        %p309 = pneg %p105
        %s310 = sand.u32 %s121, 1
        %s311 = scalar_lea.sflag [#allocation9], %s310
        %s312 = sand.u32 %s121, 1
        %s313 = smul.addr %s312, 128
        %s314 = scalar_lea.vmem [#allocation8], %s313
        %p315 = pneg %p134
        %p316 = pneg %p131
        %p317 = pneg %p160
        %p318 = pneg %p157
        %s319 = smul.u32 2, %s27
        %s320 = smul.u32 16, %s28
        %s321 = smul.u32 2, %s27
        %p322 = scmp.eq.s32.totalorder %s28, 0
        // Predicated region
        $region53: #{llama_mlp_tp.1} parent=35 // pred_check
          %p323 = pneg %p322
        $region54: #{llama_mlp_tp.1} parent=35 // pred_check_branch
          %325 = sbr.rel (%p323) target = $region56
        $region55: #{llama_mlp_tp.1} parent=35 // pred_region
          %326 = vst [vmem:[#allocation10] sm:$0xff] 0.0
          %327 = vst [vmem:[#allocation10 + $0x8] sm:$0xff] 0.0
        $region56: #{llama_mlp_tp.1} parent=35 // pred_fallthru
          _
        %v328 = vld [vmem:[#allocation2] sm:$0xff]
        %v329 = vld [vmem:[#allocation2 + $0x8] sm:$0xff]
        %v330 = vld [vmem:[%s271] sm:$0xff]
        %v331 = vld [vmem:[%s271 + $0x8] sm:$0xff]
        %v332 = vld [vmem:[%s271 + $0x10] sm:$0xff]
        %v333 = vld [vmem:[%s271 + $0x18] sm:$0xff]
        %v334 = vld [vmem:[%s271 + $0x20] sm:$0xff]
        %v335 = vld [vmem:[%s271 + $0x28] sm:$0xff]
        %v336 = vld [vmem:[%s271 + $0x30] sm:$0xff]
        %v337 = vld [vmem:[%s271 + $0x38] sm:$0xff]
        %v338 = vld [vmem:[%s271 + $0x40] sm:$0xff]
        %v339 = vld [vmem:[%s271 + $0x48] sm:$0xff]
        %v340 = vld [vmem:[%s271 + $0x50] sm:$0xff]
        %v341 = vld [vmem:[%s271 + $0x58] sm:$0xff]
        %v342 = vld [vmem:[%s271 + $0x60] sm:$0xff]
        %v343 = vld [vmem:[%s271 + $0x68] sm:$0xff]
        %v344 = vld [vmem:[%s271 + $0x70] sm:$0xff]
        %v345 = vld [vmem:[%s271 + $0x78] sm:$0xff]
        %346 = vmatprep.subr.mxu0 0.0
        %347 = vmatpush1.msra.mxu0 %v330
        %348 = vmatprep.subr.mxu0 0.0
        %349 = vmatpush1.msra.mxu0 %v331
        %350 = vmatprep.subr.mxu0 0.0
        %351 = vmatpush1.msra.mxu0 %v332
        %352 = vmatprep.subr.mxu0 0.0
        %353 = vmatpush1.msra.mxu0 %v333
        %354 = vmatprep.subr.mxu0 0.0
        %355 = vmatpush1.msra.mxu0 %v334
        %356 = vmatprep.subr.mxu0 0.0
        %357 = vmatpush1.msra.mxu0 %v335
        %358 = vmatprep.subr.mxu0 0.0
        %359 = vmatpush1.msra.mxu0 %v336
        %360 = vmatprep.subr.mxu0 0.0
        %361 = vmatpush1.msra.mxu0 %v337
        %362 = vmatprep.subr.mxu0 0.0
        %363 = vmatpush1.msra.mxu0 %v338
        %364 = vmatprep.subr.mxu0 0.0
        %365 = vmatpush1.msra.mxu0 %v339
        %366 = vmatprep.subr.mxu0 0.0
        %367 = vmatpush1.msra.mxu0 %v340
        %368 = vmatprep.subr.mxu0 0.0
        %369 = vmatpush1.msra.mxu0 %v341
        %370 = vmatprep.subr.mxu0 0.0
        %371 = vmatpush1.msra.mxu0 %v342
        %372 = vmatprep.subr.mxu0 0.0
        %373 = vmatpush1.msra.mxu0 %v343
        %374 = vmatprep.subr.mxu0 0.0
        %375 = vmatpush1.msra.mxu0 %v344
        %376 = vmatprep.subr.mxu0 0.0
        %377 = vmatpush1.msra.mxu0 %v345
        %378 = vmatprep.subr.mxu0 0.0
        %379 = vmatpush1.msra.mxu0 0.0
        %380 = vmatprep.subr.mxu0 0.0
        %381 = vmatpush1.msra.mxu0 0.0
        %382 = vmatprep.subr.mxu0 0.0
        %383 = vmatpush1.msra.mxu0 0.0
        %384 = vmatprep.subr.mxu0 0.0
        %385 = vmatpush1.msra.mxu0 0.0
        %386 = vmatprep.subr.mxu0 0.0
        %387 = vmatpush1.msra.mxu0 0.0
        %388 = vmatprep.subr.mxu0 0.0
        %389 = vmatpush1.msra.mxu0 0.0
        %390 = vmatprep.subr.mxu0 0.0
        %391 = vmatpush1.msra.mxu0 0.0
        %392 = vmatprep.subr.mxu0 0.0
        %393 = vmatpush1.msra.mxu0 0.0
        %394 = vmatprep.subr.mxu0 0.0
        %395 = vmatpush1.msra.mxu0 0.0
        %396 = vmatprep.subr.mxu0 0.0
        %397 = vmatpush1.msra.mxu0 0.0
        %398 = vmatprep.subr.mxu0 0.0
        %399 = vmatpush1.msra.mxu0 0.0
        %400 = vmatprep.subr.mxu0 0.0
        %401 = vmatpush1.msra.mxu0 0.0
        %402 = vmatprep.subr.mxu0 0.0
        %403 = vmatpush1.msra.mxu0 0.0
        %404 = vmatprep.subr.mxu0 0.0
        %405 = vmatpush1.msra.mxu0 0.0
        %406 = vmatprep.subr.mxu0 0.0
        %407 = vmatpush1.msra.mxu0 0.0
        %408 = vmatprep.subr.mxu0 0.0
        %409 = vmatpush1.msra.mxu0 0.0
        %410 = vmatprep.mubr.f32.mxu0 0.0
        %411 = vmatmul.mubr.f32.gmra.mrb[0].mxu0 %v328
        %v412 = vpop.f32.mrb[0].mxu0
        %v413 = vadd.f32 0.0, %v412
        %v414 = vpop.f32.mrb[0].mxu0
        %415 = vmatprep.mubr.f32.mxu0 0.0
        %416 = vmatmul.mubr.f32.gmra.mrb[0].mxu0 %v329
        %v417 = vpop.f32.mrb[0].mxu0
        %v418 = vadd.f32 0.0, %v417
        %v419 = vpop.f32.mrb[0].mxu0
        %420 = vdwg.mxu0
        %v421 = vld [vmem:[%s280] sm:$0xff]
        %v422 = vld [vmem:[%s280 + $0x8] sm:$0xff]
        %v423 = vld [vmem:[%s280 + $0x10] sm:$0xff]
        %v424 = vld [vmem:[%s280 + $0x18] sm:$0xff]
        %v425 = vld [vmem:[%s280 + $0x20] sm:$0xff]
        %v426 = vld [vmem:[%s280 + $0x28] sm:$0xff]
        %v427 = vld [vmem:[%s280 + $0x30] sm:$0xff]
        %v428 = vld [vmem:[%s280 + $0x38] sm:$0xff]
        %v429 = vld [vmem:[%s280 + $0x40] sm:$0xff]
        %v430 = vld [vmem:[%s280 + $0x48] sm:$0xff]
        %v431 = vld [vmem:[%s280 + $0x50] sm:$0xff]
        %v432 = vld [vmem:[%s280 + $0x58] sm:$0xff]
        %v433 = vld [vmem:[%s280 + $0x60] sm:$0xff]
        %v434 = vld [vmem:[%s280 + $0x68] sm:$0xff]
        %v435 = vld [vmem:[%s280 + $0x70] sm:$0xff]
        %v436 = vld [vmem:[%s280 + $0x78] sm:$0xff]
        %437 = vmatprep.subr.mxu0 0.0
        %438 = vmatpush1.msra.mxu0 %v421
        %439 = vmatprep.subr.mxu0 0.0
        %440 = vmatpush1.msra.mxu0 %v422
        %441 = vmatprep.subr.mxu0 0.0
        %442 = vmatpush1.msra.mxu0 %v423
        %443 = vmatprep.subr.mxu0 0.0
        %444 = vmatpush1.msra.mxu0 %v424
        %445 = vmatprep.subr.mxu0 0.0
        %446 = vmatpush1.msra.mxu0 %v425
        %447 = vmatprep.subr.mxu0 0.0
        %448 = vmatpush1.msra.mxu0 %v426
        %449 = vmatprep.subr.mxu0 0.0
        %450 = vmatpush1.msra.mxu0 %v427
        %451 = vmatprep.subr.mxu0 0.0
        %452 = vmatpush1.msra.mxu0 %v428
        %453 = vmatprep.subr.mxu0 0.0
        %454 = vmatpush1.msra.mxu0 %v429
        %455 = vmatprep.subr.mxu0 0.0
        %456 = vmatpush1.msra.mxu0 %v430
        %457 = vmatprep.subr.mxu0 0.0
        %458 = vmatpush1.msra.mxu0 %v431
        %459 = vmatprep.subr.mxu0 0.0
        %460 = vmatpush1.msra.mxu0 %v432
        %461 = vmatprep.subr.mxu0 0.0
        %462 = vmatpush1.msra.mxu0 %v433
        %463 = vmatprep.subr.mxu0 0.0
        %464 = vmatpush1.msra.mxu0 %v434
        %465 = vmatprep.subr.mxu0 0.0
        %466 = vmatpush1.msra.mxu0 %v435
        %467 = vmatprep.subr.mxu0 0.0
        %468 = vmatpush1.msra.mxu0 %v436
        %469 = vmatprep.subr.mxu0 0.0
        %470 = vmatpush1.msra.mxu0 0.0
        %471 = vmatprep.subr.mxu0 0.0
        %472 = vmatpush1.msra.mxu0 0.0
        %473 = vmatprep.subr.mxu0 0.0
        %474 = vmatpush1.msra.mxu0 0.0
        %475 = vmatprep.subr.mxu0 0.0
        %476 = vmatpush1.msra.mxu0 0.0
        %477 = vmatprep.subr.mxu0 0.0
        %478 = vmatpush1.msra.mxu0 0.0
        %479 = vmatprep.subr.mxu0 0.0
        %480 = vmatpush1.msra.mxu0 0.0
        %481 = vmatprep.subr.mxu0 0.0
        %482 = vmatpush1.msra.mxu0 0.0
        %483 = vmatprep.subr.mxu0 0.0
        %484 = vmatpush1.msra.mxu0 0.0
        %485 = vmatprep.subr.mxu0 0.0
        %486 = vmatpush1.msra.mxu0 0.0
        %487 = vmatprep.subr.mxu0 0.0
        %488 = vmatpush1.msra.mxu0 0.0
        %489 = vmatprep.subr.mxu0 0.0
        %490 = vmatpush1.msra.mxu0 0.0
        %491 = vmatprep.subr.mxu0 0.0
        %492 = vmatpush1.msra.mxu0 0.0
        %493 = vmatprep.subr.mxu0 0.0
        %494 = vmatpush1.msra.mxu0 0.0
        %495 = vmatprep.subr.mxu0 0.0
        %496 = vmatpush1.msra.mxu0 0.0
        %497 = vmatprep.subr.mxu0 0.0
        %498 = vmatpush1.msra.mxu0 0.0
        %499 = vmatprep.subr.mxu0 0.0
        %500 = vmatpush1.msra.mxu0 0.0
        %501 = vmatprep.mubr.f32.mxu0 0.0
        %502 = vmatmul.mubr.f32.gmra.mrb[0].mxu0 %v328
        %v503 = vpop.f32.mrb[0].mxu0
        %v504 = vadd.f32 0.0, %v503
        %v505 = vpop.f32.mrb[0].mxu0
        %506 = vmatprep.mubr.f32.mxu0 0.0
        %507 = vmatmul.mubr.f32.gmra.mrb[0].mxu0 %v329
        %v508 = vpop.f32.mrb[0].mxu0
        %v509 = vadd.f32 0.0, %v508
        %v510 = vpop.f32.mrb[0].mxu0
        %511 = vdwg.mxu0
        %v512 = vxor.u32 %v413, 2147483648
        %v513 = vxor.u32 %v418, 2147483648
        %v514 = vmul.f32 %v512, 1.442695
        %v515 = vpow.pop %v514
        %v516 = vmul.f32 %v513, 1.442695
        %v517 = vpow.pop %v516
        %v518 = vadd.f32 %v515, 1.0
        %v519 = vadd.f32 %v517, 1.0
        %v520 = vrcp.pop %v518
        %v521 = vmul.f32 1.0, %v520
        %v522 = vrcp.pop %v519
        %v523 = vmul.f32 1.0, %v522
        %v524 = vmul.f32 %v413, %v521
        %v525 = vmul.f32 %v418, %v523
        %v526 = vmul.f32 %v524, %v504
        %v527 = vmul.f32 %v525, %v509
        %v528 = vld [vmem:[#allocation10] sm:$0xff]
        %v529 = vld [vmem:[#allocation10 + $0x8] sm:$0xff]
        %v530 = vld [vmem:[%s289] sm:$0xff]
        %v531 = vld [vmem:[%s289 + $0x8] sm:$0xff]
        %v532 = vld [vmem:[%s289 + $0x10] sm:$0xff]
        %v533 = vld [vmem:[%s289 + $0x18] sm:$0xff]
        %v534 = vld [vmem:[%s289 + $0x20] sm:$0xff]
        %v535 = vld [vmem:[%s289 + $0x28] sm:$0xff]
        %v536 = vld [vmem:[%s289 + $0x30] sm:$0xff]
        %v537 = vld [vmem:[%s289 + $0x38] sm:$0xff]
        %v538 = vld [vmem:[%s289 + $0x40] sm:$0xff]
        %v539 = vld [vmem:[%s289 + $0x48] sm:$0xff]
        %v540 = vld [vmem:[%s289 + $0x50] sm:$0xff]
        %v541 = vld [vmem:[%s289 + $0x58] sm:$0xff]
        %v542 = vld [vmem:[%s289 + $0x60] sm:$0xff]
        %v543 = vld [vmem:[%s289 + $0x68] sm:$0xff]
        %v544 = vld [vmem:[%s289 + $0x70] sm:$0xff]
        %v545 = vld [vmem:[%s289 + $0x78] sm:$0xff]
        %546 = vmatprep.subr.mxu0 0.0
        %547 = vmatpush1.msra.mxu0 %v530
        %548 = vmatprep.subr.mxu0 0.0
        %549 = vmatpush1.msra.mxu0 %v531
        %550 = vmatprep.subr.mxu0 0.0
        %551 = vmatpush1.msra.mxu0 %v532
        %552 = vmatprep.subr.mxu0 0.0
        %553 = vmatpush1.msra.mxu0 %v533
        %554 = vmatprep.subr.mxu0 0.0
        %555 = vmatpush1.msra.mxu0 %v534
        %556 = vmatprep.subr.mxu0 0.0
        %557 = vmatpush1.msra.mxu0 %v535
        %558 = vmatprep.subr.mxu0 0.0
        %559 = vmatpush1.msra.mxu0 %v536
        %560 = vmatprep.subr.mxu0 0.0
        %561 = vmatpush1.msra.mxu0 %v537
        %562 = vmatprep.subr.mxu0 0.0
        %563 = vmatpush1.msra.mxu0 %v538
        %564 = vmatprep.subr.mxu0 0.0
        %565 = vmatpush1.msra.mxu0 %v539
        %566 = vmatprep.subr.mxu0 0.0
        %567 = vmatpush1.msra.mxu0 %v540
        %568 = vmatprep.subr.mxu0 0.0
        %569 = vmatpush1.msra.mxu0 %v541
        %570 = vmatprep.subr.mxu0 0.0
        %571 = vmatpush1.msra.mxu0 %v542
        %572 = vmatprep.subr.mxu0 0.0
        %573 = vmatpush1.msra.mxu0 %v543
        %574 = vmatprep.subr.mxu0 0.0
        %575 = vmatpush1.msra.mxu0 %v544
        %576 = vmatprep.subr.mxu0 0.0
        %577 = vmatpush1.msra.mxu0 %v545
        %578 = vmatprep.subr.mxu0 0.0
        %579 = vmatpush1.msra.mxu0 0.0
        %580 = vmatprep.subr.mxu0 0.0
        %581 = vmatpush1.msra.mxu0 0.0
        %582 = vmatprep.subr.mxu0 0.0
        %583 = vmatpush1.msra.mxu0 0.0
        %584 = vmatprep.subr.mxu0 0.0
        %585 = vmatpush1.msra.mxu0 0.0
        %586 = vmatprep.subr.mxu0 0.0
        %587 = vmatpush1.msra.mxu0 0.0
        %588 = vmatprep.subr.mxu0 0.0
        %589 = vmatpush1.msra.mxu0 0.0
        %590 = vmatprep.subr.mxu0 0.0
        %591 = vmatpush1.msra.mxu0 0.0
        %592 = vmatprep.subr.mxu0 0.0
        %593 = vmatpush1.msra.mxu0 0.0
        %594 = vmatprep.subr.mxu0 0.0
        %595 = vmatpush1.msra.mxu0 0.0
        %596 = vmatprep.subr.mxu0 0.0
        %597 = vmatpush1.msra.mxu0 0.0
        %598 = vmatprep.subr.mxu0 0.0
        %599 = vmatpush1.msra.mxu0 0.0
        %600 = vmatprep.subr.mxu0 0.0
        %601 = vmatpush1.msra.mxu0 0.0
        %602 = vmatprep.subr.mxu0 0.0
        %603 = vmatpush1.msra.mxu0 0.0
        %604 = vmatprep.subr.mxu0 0.0
        %605 = vmatpush1.msra.mxu0 0.0
        %606 = vmatprep.subr.mxu0 0.0
        %607 = vmatpush1.msra.mxu0 0.0
        %608 = vmatprep.subr.mxu0 0.0
        %609 = vmatpush1.msra.mxu0 0.0
        %610 = vmatprep.mubr.f32.mxu0 0.0
        %611 = vmatmul.mubr.f32.gmra.mrb[0].mxu0 %v526
        %v612 = vpop.f32.mrb[0].mxu0
        %v613 = vadd.f32 0.0, %v612
        %v614 = vpop.f32.mrb[0].mxu0
        %615 = vmatprep.mubr.f32.mxu0 0.0
        %616 = vmatmul.mubr.f32.gmra.mrb[0].mxu0 %v527
        %v617 = vpop.f32.mrb[0].mxu0
        %v618 = vadd.f32 0.0, %v617
        %v619 = vpop.f32.mrb[0].mxu0
        %620 = vdwg.mxu0
        %v621 = vadd.f32 %v528, %v613
        %v622 = vadd.f32 %v529, %v618
        %623 = vst [vmem:[#allocation10] sm:$0xff] %v621
        %624 = vst [vmem:[#allocation10 + $0x8] sm:$0xff] %v622
        // Predicated region
        $region57: #{llama_mlp_tp.1} parent=35 // pred_check
          %p625 = pneg %p157
        $region58: #{llama_mlp_tp.1} parent=35 // pred_check_branch
          %627 = sbr.rel (%p625) target = $region60
        $region59: #{llama_mlp_tp.1} parent=35 // pred_region
          %s628 = smul.u32 2, %s27
          %s630 = ssub.s32 256, 256
          %631 = vsyncadd [#allocation4], %s630
          %s632 = smul.addr %s628, 128
          %s633 = scalar_lea.hbm %s4, %s632
          %s634 = sshll.u32 [#allocation10], 4
          %s635 = int_to_ptr.vmem [resolvable:$true] %s634
          %640 = dma.vmem_to_hbm [thread:$0]  %s635, 256, %s633, [#allocation4], 128, 128, 8
        $region60: #{llama_mlp_tp.1} parent=35 // pred_fallthru
          _
        // Predicated region
        $region61: #{llama_mlp_tp.1} parent=35 // pred_check
          %p641 = pneg %p157
        $region62: #{llama_mlp_tp.1} parent=35 // pred_check_branch
          %643 = sbr.rel (%p641) target = $region64
        $region63: #{llama_mlp_tp.1} parent=35 // pred_region
          %644 = dma.done [#allocation4], 256
        $region64: #{llama_mlp_tp.1} parent=35 // pred_fallthru
          _
      $region36: #{llama_mlp_tp.1} parent=5 // pred_fallthru
        _
      %p645 = scmp.le.s32.totalorder 2, %s18
      // Predicated region
      $region65: #{llama_mlp_tp.1} parent=5 // pred_check
        %p646 = pneg %p645
      $region66: #{llama_mlp_tp.1} parent=5 // pred_check_branch
        %648 = sbr.rel (%p646) target = $region68
      $region67: #{llama_mlp_tp.1} parent=5 // pred_region
        %s649 = ssub.s32 %s18, 2
      $region68: #{llama_mlp_tp.1} parent=5 // pred_fallthru
        _
    $region6: #{llama_mlp_tp.1} parent=1 // loop_footer
      %s22 = sadd.s32 1, %s18
    $region7: #{llama_mlp_tp.1} parent=1 // loop_footer_branch
      %17 = sbr.rel target = $region3
    $region8: #{llama_mlp_tp.1} parent=1 // loop_exit
      _
    %650 = vsyncpa [#allocation3], 1
    %s651 = scalar_lea.sflag [#allocation3], 1
    %652 = vsyncpa %s651, 1
    %653 = vsyncpa [#allocation6], 1
    %s654 = scalar_lea.sflag [#allocation6], 1
    %655 = vsyncpa %s654, 1
    %656 = vsyncpa [#allocation9], 1
    %s657 = scalar_lea.sflag [#allocation9], 1
    %658 = vsyncpa %s657, 1
    %659 = vsyncpa [#allocation4], 1
    %s660 = scalar_lea.sflag [#allocation4], 1
    %661 = vsyncpa %s660, 1

</llo_original>
